<compile_context>
chip_gen: v7x
topology: tpu7x:2x2x1
jax: 0.10.0
libtpu: 0.0.40
codegen_flags: <defaults>
</compile_context>

<pallas_src>
import functools

import jax
import jax.numpy as jnp
from jax.experimental import pallas as pl
from jax.experimental.pallas import tpu as pltpu


LANE = 128
_TARGET_BLOCK_BYTES = 2 * 1024 * 1024    # ~2 MiB per input per block
_ACC_ROWS_MAX = 64                       # 8 independent f32 accumulator vregs


def _round_down(x, m):
    return (x // m) * m


def _round_up(x, m):
    return -(-x // m) * m


def _cdiv(a, b):
    return -(-a // b)


def _num_tensorcores():
    """Best-effort TensorCore count addressable by one pallas_call on this chip."""
    try:
        kind = (getattr(jax.devices()[0], "device_kind", "") or "").lower()
    except Exception:
        return 1
    # v4 (megacore) and v7x drive two TensorCores per device; v2/v3/v5e/v6e one.
    return 2 if ("v4" in kind or "v7" in kind or "7x" in kind) else 1


# ----------------------------- Pallas kernel ------------------------------ #
def _sumsq_diff_kernel(x_ref, y_ref, o_ref, *, sub, acc_rows, lane, valid_rows,
                       blocks_per_core, full_blocks, needs_mask):
    """o_ref (resident per core) += per-lane partial sums of (x - y)^2."""
    c = pl.program_id(0)          # TensorCore split axis
    i = pl.program_id(1)          # streaming reduction axis
    folds = sub // acc_rows

    @pl.when(i == 0)
    def _init():
        o_ref[...] = jnp.zeros_like(o_ref)

    def accumulate(masked):
        blk = c * blocks_per_core + i          # un-clamped logical block id

        def body(k):
            r0 = pl.multiple_of(k * acc_rows, acc_rows)
            x = x_ref[pl.ds(r0, acc_rows), :].astype(jnp.float32)
            y = y_ref[pl.ds(r0, acc_rows), :].astype(jnp.float32)
            d = x - y
            if masked:
                # Zero rows past the valid region (ragged tail block and any
                # clamped overrun block) BEFORE squaring, so stale/undefined
                # VMEM data in the partial DMA cannot leak into the sum.
                rows = (blk * sub + r0 +
                        jax.lax.broadcasted_iota(jnp.int32, (acc_rows, lane), 0))
                d = jnp.where(rows < valid_rows, d, 0.0)
            o_ref[...] += d * d
        return body

    if needs_mask:
        is_edge = (c * blocks_per_core + i) >= full_blocks

        @pl.when(jnp.logical_not(is_edge))
        def _hot():                       # fully-valid blocks: no mask work
            @pl.loop(0, folds)
            def _(k):
                accumulate(False)(k)

        @pl.when(is_edge)
        def _edge():                      # tail / overrun block only
            @pl.loop(0, folds)
            def _(k):
                accumulate(True)(k)
    else:
        @pl.loop(0, folds)
        def _(k):
            accumulate(False)(k)


def pallas_mse_loss(inp, tgt, tile_rows=None):
    """MSELoss(reduction='mean'): mean((x - y)^2) via a Pallas TPU streaming kernel."""
    assert inp.shape == tgt.shape, "MSE requires matching shapes"
    n = int(inp.size)
    assert n > 0

    xf = inp.reshape(-1)                  # free bitcast reshape, native dtype
    yf = tgt.reshape(-1)
    rows = n // LANE
    tail = n - rows * LANE

    # <128-element ragged tail: tiny plain-JAX sum (no full-array pad copy).
    if tail:
        xt = xf[rows * LANE:].astype(jnp.float32)
        yt = yf[rows * LANE:].astype(jnp.float32)
        tail_sum = jnp.sum((xt - yt) ** 2)
    else:
        tail_sum = jnp.float32(0.0)

    inv_n = 1.0 / float(n)                # exact in float64; one f32 rounding at the end

    if rows == 0:                         # whole tensor fits in the tail path
        return tail_sum * inv_n

    # TODO(synk): when n % 128 != 0 the slice below still materializes one copy
    # of each input; a manual-DMA path over 1-D pl.ANY HBM refs would avoid it.
    if tail:
        xf = jax.lax.slice(xf, (0,), (rows * LANE,))
        yf = jax.lax.slice(yf, (0,), (rows * LANE,))
    X = xf.reshape(rows, LANE)
    Y = yf.reshape(rows, LANE)

    ix = jnp.dtype(X.dtype).itemsize
    iy = jnp.dtype(Y.dtype).itemsize
    # Sublane packing multiple of the narrowest streamed dtype (8 f32/16 bf16/32 i8).
    sub_mult = 8 * max(1, 4 // min(ix, iy))

    # Tiny inputs: pad rows up to one packing multiple (negligible copy).
    if rows < sub_mult:
        X = jnp.pad(X, ((0, sub_mult - rows), (0, 0)))
        Y = jnp.pad(Y, ((0, sub_mult - rows), (0, 0)))
    r_arr = X.shape[0]

    # dtype-aware block size: ~2 MiB per input per block (4096 f32 / 8192 bf16 rows).
    if tile_rows is None:
        tile_rows = max(sub_mult, _TARGET_BLOCK_BYTES // (LANE * max(ix, iy)))
    sub = min(int(tile_rows), _round_up(rows, sub_mult))
    sub = max(sub_mult, _round_down(sub, sub_mult))
    if sub > _ACC_ROWS_MAX:
        sub = _round_down(sub, _ACC_ROWS_MAX)   # whole number of accumulator folds
    acc_rows = min(_ACC_ROWS_MAX, sub)

    num_blocks = _cdiv(r_arr, sub)
    n_cores = _num_tensorcores()
    n_split = n_cores if (n_cores > 1 and num_blocks >= n_cores) else 1
    blocks_per_core = _cdiv(num_blocks, n_split)
    needs_mask = (rows % sub != 0) or (n_split * blocks_per_core != num_blocks)
    full_blocks = rows // sub

    def block_map(c, i):
        # Clamp virtual overrun blocks; their contribution is masked to zero.
        return (jnp.minimum(c * blocks_per_core + i, num_blocks - 1), 0)

    kernel = functools.partial(
        _sumsq_diff_kernel, sub=sub, acc_rows=acc_rows, lane=LANE,
        valid_rows=rows, blocks_per_core=blocks_per_core,
        full_blocks=full_blocks, needs_mask=needs_mask)

    out_bytes = acc_rows * LANE * 4 * n_split
    cost = pl.CostEstimate(flops=3 * X.size, transcendentals=0,
                           bytes_accessed=X.size * ix + Y.size * iy + out_bytes)

    # Raise the scoped-VMEM limit only if the double-buffered blocks need it
    # (v5e default is 16 MiB; stay well below v7x's 64 MiB physical per-TC VMEM).
    vmem_need = 2 * sub * LANE * (ix + iy) + 2 * acc_rows * LANE * 4
    extra = {}
    if vmem_need > 12 * 1024 * 1024:
        extra["vmem_limit_bytes"] = int(min(48 * 1024 * 1024,
                                            max(32 * 1024 * 1024, 2 * vmem_need)))

    def call(dim_sems):
        return pl.pallas_call(
            kernel,
            out_shape=jax.ShapeDtypeStruct((acc_rows * n_split, LANE), jnp.float32),
            grid_spec=pltpu.PrefetchScalarGridSpec(
                num_scalar_prefetch=0,
                grid=(n_split, blocks_per_core),
                in_specs=[pl.BlockSpec((sub, LANE), block_map),
                          pl.BlockSpec((sub, LANE), block_map)],
                out_specs=pl.BlockSpec((acc_rows, LANE), lambda c, i: (c, 0)),
            ),
            compiler_params=pltpu.CompilerParams(dimension_semantics=dim_sems, **extra),
            cost_estimate=cost,
        )(X, Y)

    if n_split > 1:
        # Real 2-TensorCore split on v7x/v4; fall back to plain "parallel" if
        # CORE_PARALLEL lowering is rejected on this chip/toolchain.
        sem_choices = [(pltpu.CORE_PARALLEL, pltpu.ARBITRARY),
                       ("parallel", "arbitrary")]
    else:
        sem_choices = [("arbitrary", "arbitrary")]

    partials = None
    last_err = None
    for sems in sem_choices:
        try:
            partials = call(sems)
            break
        except Exception as e:            # lowering rejected -> try next semantics
            last_err = e
    if partials is None:
        raise last_err

    total = jnp.sum(partials) + tail_sum   # <= 128x128 f32 final reduce in plain JAX
    return total * inv_n


# --------------------------- Module equivalent ----------------------------- #
class SkipLastTargetChannelWrapper:
    """JAX/Pallas port of SegReg's SkipLastTargetChannelWrapper.

    NOTE: the provided PyTorch source does NOT slice off the last target
    channel in forward(); it only asserts C > 1, optionally squeezes dim=1
    (a no-op under the assert), and applies the wrapped loss.  We reproduce
    exactly that behavior.
    """

    def __init__(self, loss, squeeze_channel=False):
        self.loss = loss
        self.squeeze_channel = squeeze_channel

    def __call__(self, input, target):
        assert target.shape[1] > 1, (
            "Target tensor has a singleton channel dimension, cannot remove channel"
        )
        if self.squeeze_channel:
            # torch.squeeze(target, dim=1) only squeezes when the dim is 1
            if target.shape[1] == 1:
                target = jnp.squeeze(target, axis=1)
        return self.loss(input, target)


# --------------------------------- Demo ------------------------------------ #
if __name__ == "__main__":
    key = jax.random.PRNGKey(0)
    k1, k2 = jax.random.split(key)

    B, C, H, W = 2, 4, 16, 16  # NCHW, C > 1 as required by the wrapper
    x = jax.random.normal(k1, (B, C, H, W), dtype=jnp.float32)  # "input"
    t = jax.random.normal(k2, (B, C, H, W), dtype=jnp.float32)  # "target"

    wrapper = SkipLastTargetChannelWrapper(pallas_mse_loss, squeeze_channel=False)
    out = jax.block_until_ready(wrapper(x, t))
    ref = jnp.mean((x - t) ** 2)
    assert jnp.allclose(out, ref, rtol=1e-5, atol=1e-6), (out, ref)

    # multi-block streaming path
    out2 = jax.block_until_ready(pallas_mse_loss(x, t, tile_rows=8))
    assert jnp.allclose(out2, ref, rtol=1e-5, atol=1e-6), (out2, ref)

    # ragged row count -> tail-only masked block path
    x3 = jax.random.normal(k1, (2, 4, 16, 40), dtype=jnp.float32)
    t3 = jax.random.normal(k2, (2, 4, 16, 40), dtype=jnp.float32)
    ref3 = jnp.mean((x3 - t3) ** 2)
    out3 = jax.block_until_ready(pallas_mse_loss(x3, t3, tile_rows=16))
    assert jnp.allclose(out3, ref3, rtol=1e-5, atol=1e-6), (out3, ref3)

    # n % 128 != 0 -> plain-JAX lane tail + tiny masked block
    x4 = jax.random.normal(k1, (2, 3, 5, 7), dtype=jnp.float32)
    t4 = jax.random.normal(k2, (2, 3, 5, 7), dtype=jnp.float32)
    ref4 = jnp.mean((x4 - t4) ** 2)
    out4 = jax.block_until_ready(pallas_mse_loss(x4, t4))
    assert jnp.allclose(out4, ref4, rtol=1e-5, atol=1e-6), (out4, ref4)

    # n < 128 -> pure-JAX path (no kernel launch)
    x5 = jax.random.normal(k1, (2, 5, 5), dtype=jnp.float32)
    t5 = jax.random.normal(k2, (2, 5, 5), dtype=jnp.float32)
    ref5 = jnp.mean((x5 - t5) ** 2)
    out5 = jax.block_until_ready(pallas_mse_loss(x5, t5))
    assert jnp.allclose(out5, ref5, rtol=1e-5, atol=1e-6), (out5, ref5)

    # exercises the chunked accumulate loop (folds > 1, wide accumulator)
    x6 = jax.random.normal(k1, (2, 4, 32, 128), dtype=jnp.float32)
    t6 = jax.random.normal(k2, (2, 4, 32, 128), dtype=jnp.float32)
    ref6 = jnp.mean((x6 - t6) ** 2)
    out6 = jax.block_until_ready(pallas_mse_loss(x6, t6, tile_rows=128))
    assert jnp.allclose(out6, ref6, rtol=1e-5, atol=1e-6), (out6, ref6)

    # native bf16 streaming (upcast to f32 happens inside the kernel)
    xb, tb = x.astype(jnp.bfloat16), t.astype(jnp.bfloat16)
    refb = jnp.mean((xb.astype(jnp.float32) - tb.astype(jnp.float32)) ** 2)
    outb = jax.block_until_ready(pallas_mse_loss(xb, tb))
    assert jnp.allclose(outb, refb, rtol=2e-2, atol=1e-3), (outb, refb)

    print("KERNEL_OK")
</pallas_src>

<mosaic_0001>
module attributes {stable_mosaic.version = 11 : i64} {
  func.func @_sumsq_diff_kernel(%arg0: i32, %arg1: i32, %arg2: memref<16x128xf32, #tpu.memory_space<vmem>>, %arg3: memref<16x128xf32, #tpu.memory_space<vmem>>, %arg4: memref<16x128xf32, #tpu.memory_space<vmem>>) attributes {dimension_semantics = [#tpu.dimension_semantics<arbitrary>, #tpu.dimension_semantics<arbitrary>], iteration_bounds = array<i64: 1, 1>, scalar_prefetch = 0 : i64, scratch_operands = 0 : i64, tpu.core_type = #tpu.core_type<tc>, window_params = [{transform_indices = @transform_0, window_bounds = array<i64: 16, 128>}, {transform_indices = @transform_1, window_bounds = array<i64: 16, 128>}, {transform_indices = @transform_2, window_bounds = array<i64: 16, 128>}]} {
    %c0_i32 = arith.constant 0 : i32
    %0 = arith.cmpi eq, %arg1, %c0_i32 : i32
    %1 = arith.extui %0 : i1 to i32
    %c0_i32_0 = arith.constant 0 : i32
    %2 = arith.cmpi ne, %1, %c0_i32_0 : i32
    scf.if %2 {
      %cst = arith.constant 0.000000e+00 : f32
      %16 = vector.broadcast %cst : f32 to vector<16x128xf32>
      %c0_9 = arith.constant 0 : index
      %c0_10 = arith.constant 0 : index
      %17 = vector.load %arg4[%c0_9, %c0_10] : memref<16x128xf32, #tpu.memory_space<vmem>>, vector<16x128xf32>
      tpu.vector_store %arg4[%c0_9, %c0_10], %16 {strides = array<i32>} : memref<16x128xf32, #tpu.memory_space<vmem>>, vector<16x128xf32>,
    } else {
    }
    %c0_i32_1 = arith.constant 0 : i32
    %c1_i32 = arith.constant 1 : i32
    %3 = arith.muli %c0_i32_1, %c1_i32 : i32
    %c0_i32_2 = arith.constant 0 : i32
    %4 = arith.addi %c0_i32_2, %3 : i32
    %c16_i32 = arith.constant 16 : i32
    %5 = arith.muli %4, %c16_i32 : i32
    %6 = tpu.assume_multiple %5, 16 : i32
    %7 = arith.index_cast %6 : i32 to index
    %c0 = arith.constant 0 : index
    %8 = vector.load %arg2[%7, %c0] : memref<16x128xf32, #tpu.memory_space<vmem>>, vector<16x128xf32>
    %9 = arith.index_cast %6 : i32 to index
    %c0_3 = arith.constant 0 : index
    %10 = vector.load %arg3[%9, %c0_3] : memref<16x128xf32, #tpu.memory_space<vmem>>, vector<16x128xf32>
    %11 = arith.subf %8, %10 : vector<16x128xf32>
    %c0_4 = arith.constant 0 : index
    %c0_5 = arith.constant 0 : index
    %12 = vector.load %arg4[%c0_4, %c0_5] : memref<16x128xf32, #tpu.memory_space<vmem>>, vector<16x128xf32>
    %13 = arith.mulf %11, %11 : vector<16x128xf32>
    %14 = arith.addf %12, %13 : vector<16x128xf32>
    %c0_6 = arith.constant 0 : index
    %c0_7 = arith.constant 0 : index
    %15 = vector.load %arg4[%c0_6, %c0_7] : memref<16x128xf32, #tpu.memory_space<vmem>>, vector<16x128xf32>
    tpu.vector_store %arg4[%c0_6, %c0_7], %14 {strides = array<i32>} : memref<16x128xf32, #tpu.memory_space<vmem>>, vector<16x128xf32>,
    %c1_i32_8 = arith.constant 1 : i32
    return
  }
  func.func @transform_0(%arg0: i32, %arg1: i32) -> (i32, i32) {
    %c1_i32 = arith.constant 1 : i32
    %0 = arith.muli %arg0, %c1_i32 : i32
    %1 = arith.addi %0, %arg1 : i32
    %c0_i32 = arith.constant 0 : i32
    %2 = arith.minsi %1, %c0_i32 : i32
    %c0_i32_0 = arith.constant 0 : i32
    %c0_i32_1 = arith.constant 0 : i32
    return %2, %c0_i32_0 : i32, i32
  }
  func.func @transform_1(%arg0: i32, %arg1: i32) -> (i32, i32) {
    %c1_i32 = arith.constant 1 : i32
    %0 = arith.muli %arg0, %c1_i32 : i32
    %1 = arith.addi %0, %arg1 : i32
    %c0_i32 = arith.constant 0 : i32
    %2 = arith.minsi %1, %c0_i32 : i32
    %c0_i32_0 = arith.constant 0 : i32
    %c0_i32_1 = arith.constant 0 : i32
    return %2, %c0_i32_0 : i32, i32
  }
  func.func @transform_2(%arg0: i32, %arg1: i32) -> (i32, i32) {
    %c0_i32 = arith.constant 0 : i32
    %c0_i32_0 = arith.constant 0 : i32
    return %arg0, %c0_i32 : i32, i32
  }
}

</mosaic_0001>

<llo_original>
// kernel: tpu_custom_call.1
$region0: #{tpu_custom_call.1}
  #allocation0 [shape = 'u32[]', space=smem, size = 0x4, offset = 0x4, fixed_abs, tag = 'smem constant byte address 0x4 - core index']
  #allocation1 [shape = 'u32[144,128]{1,0:T(1,128)}', space=vmem, size = 0x12000, scoped, tag = 'internal scratch']
  %s0 = inlined_call_operand.hbm [shape: f32[16,128], index: 0, kind: input, shape index: {}]
  %s1 = inlined_call_operand.hbm [shape: f32[16,128], index: 1, kind: input, shape index: {}]
  %s2 = inlined_call_operand.hbm [shape: f32[16,128], index: 2, kind: output, shape index: {}]
  %s3 = sld [smem:[#allocation0]]
  $region30: #{tpu_custom_call.1} parent=0
    _
  %s5 = ssub.s32 1, %s3
  %s6 = scalar_select 0, %s5, %s3
  $region1: #{tpu_custom_call.1} parent=0
    #allocation2 [shape = 'u8[8192]{0}', space=vmem, size = 0x2000, scoped, tag = 'input window, operand 0, single buffered']
    #allocation3 [shape = 's32[1]{0}', space=sflag, size = 0x4, scoped, tag = 'scoped memory for tpu_custom_call.1']
    #allocation4 [shape = 's32[1]{0}', space=sflag, size = 0x4, scoped, tag = 'scoped memory for tpu_custom_call.1']
    #allocation5 [shape = 'u8[8192]{0}', space=vmem, size = 0x2000, scoped, tag = 'input window, operand 1, single buffered']
    #allocation6 [shape = 's32[1]{0}', space=sflag, size = 0x4, scoped, tag = 'scoped memory for tpu_custom_call.1']
    #allocation7 [shape = 'u8[8192]{0}', space=vmem, size = 0x2000, scoped, tag = 'output window, operand 0, single buffered']
    %7 = vsyncpa [#allocation3], 0
    %8 = vsyncpa [#allocation6], 0
    %9 = vsyncpa [#allocation4], 0
    // Predicated region
    $region2: #{tpu_custom_call.1} parent=1 // pred_check
      _
    $region3: #{tpu_custom_call.1} parent=1 // pred_check_branch
      %11 = sbr.rel (0) target = $region5
    $region4: #{tpu_custom_call.1} parent=1 // pred_region
      %s12 = sadd.s32 0, 0
      %p13 = scmp.lt.s32.totalorder %s12, 0
      %s14 = scalar_select %p13, %s12, 0
      %s15 = smul.u32 2, %s14
      %s17 = ssub.s32 256, 256
      %18 = vsyncadd [#allocation3], %s17
      %s19 = smul.addr %s15, 128
      %s20 = scalar_lea.hbm %s0, %s19
      %s21 = sshll.u32 [#allocation2], 4
      %s22 = int_to_ptr.vmem [resolvable:$true] %s21
      %27 = dma.hbm_to_vmem [thread:$0]  %s20, 256, %s22, [#allocation3], 128, 128, 8
    $region5: #{tpu_custom_call.1} parent=1 // pred_fallthru
      _
    // Predicated region
    $region6: #{tpu_custom_call.1} parent=1 // pred_check
      _
    $region7: #{tpu_custom_call.1} parent=1 // pred_check_branch
      %29 = sbr.rel (0) target = $region9
    $region8: #{tpu_custom_call.1} parent=1 // pred_region
      %s30 = sadd.s32 0, 0
      %p31 = scmp.lt.s32.totalorder %s30, 0
      %s32 = scalar_select %p31, %s30, 0
      %s33 = smul.u32 2, %s32
      %s35 = ssub.s32 256, 256
      %36 = vsyncadd [#allocation6], %s35
      %s37 = smul.addr %s33, 128
      %s38 = scalar_lea.hbm %s1, %s37
      %s39 = sshll.u32 [#allocation5], 4
      %s40 = int_to_ptr.vmem [resolvable:$true] %s39
      %45 = dma.hbm_to_vmem [thread:$0]  %s38, 256, %s40, [#allocation6], 128, 128, 8
    $region9: #{tpu_custom_call.1} parent=1 // pred_fallthru
      _
    // Predicated region
    $region10: #{tpu_custom_call.1} parent=1 // pred_check
      _
    $region11: #{tpu_custom_call.1} parent=1 // pred_check_branch
      %47 = sbr.rel (0) target = $region13
    $region12: #{tpu_custom_call.1} parent=1 // pred_region
      %48 = dma.done [#allocation3], 256
    $region13: #{tpu_custom_call.1} parent=1 // pred_fallthru
      _
    // Predicated region
    $region14: #{tpu_custom_call.1} parent=1 // pred_check
      _
    $region15: #{tpu_custom_call.1} parent=1 // pred_check_branch
      %50 = sbr.rel (0) target = $region17
    $region16: #{tpu_custom_call.1} parent=1 // pred_region
      %51 = dma.done [#allocation6], 256
    $region17: #{tpu_custom_call.1} parent=1 // pred_fallthru
      _
    %s52 = sadd.s32 0, 0
    %p53 = scmp.lt.s32.totalorder %s52, 0
    %s54 = scalar_select %p53, %s52, 0
    %s55 = smul.u32 2, %s54
    %s56 = sadd.s32 0, 0
    %p57 = scmp.lt.s32.totalorder %s56, 0
    %s58 = scalar_select %p57, %s56, 0
    %s59 = smul.u32 2, %s58
    %p60 = scmp.eq.s32.totalorder 0, 0
    // Predicated region
    $region18: #{tpu_custom_call.1} parent=1 // pred_check
      %p61 = pneg %p60
    $region19: #{tpu_custom_call.1} parent=1 // pred_check_branch
      %63 = sbr.rel (%p61) target = $region21
    $region20: #{tpu_custom_call.1} parent=1 // pred_region
      %64 = vst [vmem:[#allocation7] sm:$0xff] 0.0
      %65 = vst [vmem:[#allocation7 + $0x8] sm:$0xff] 0.0
    $region21: #{tpu_custom_call.1} parent=1 // pred_fallthru
      _
    %v66 = vld [vmem:[#allocation2] sm:$0xff]
    %v67 = vld [vmem:[#allocation2 + $0x8] sm:$0xff]
    %v68 = vld [vmem:[#allocation5] sm:$0xff]
    %v69 = vld [vmem:[#allocation5 + $0x8] sm:$0xff]
    %v70 = vsub.f32 %v66, %v68
    %v71 = vsub.f32 %v67, %v69
    %v72 = vld [vmem:[#allocation7] sm:$0xff]
    %v73 = vld [vmem:[#allocation7 + $0x8] sm:$0xff]
    %v74 = vmul.f32 %v70, %v70
    %v75 = vmul.f32 %v71, %v71
    %v76 = vadd.f32 %v72, %v74
    %v77 = vadd.f32 %v73, %v75
    %78 = vst [vmem:[#allocation7] sm:$0xff] %v76
    %79 = vst [vmem:[#allocation7 + $0x8] sm:$0xff] %v77
    // Predicated region
    $region22: #{tpu_custom_call.1} parent=1 // pred_check
      _
    $region23: #{tpu_custom_call.1} parent=1 // pred_check_branch
      %81 = sbr.rel (0) target = $region25
    $region24: #{tpu_custom_call.1} parent=1 // pred_region
      %s83 = ssub.s32 256, 256
      %84 = vsyncadd [#allocation4], %s83
      %s85 = sshll.u32 [#allocation7], 4
      %s86 = int_to_ptr.vmem [resolvable:$true] %s85
      %91 = dma.vmem_to_hbm [thread:$0]  %s86, 256, %s2, [#allocation4], 128, 128, 8
    $region25: #{tpu_custom_call.1} parent=1 // pred_fallthru
      _
    // Predicated region
    $region26: #{tpu_custom_call.1} parent=1 // pred_check
      _
    $region27: #{tpu_custom_call.1} parent=1 // pred_check_branch
      %93 = sbr.rel (0) target = $region29
    $region28: #{tpu_custom_call.1} parent=1 // pred_region
      %94 = dma.done [#allocation4], 256
    $region29: #{tpu_custom_call.1} parent=1 // pred_fallthru
      _
    %95 = vsyncpa [#allocation3], 1
    %96 = vsyncpa [#allocation6], 1
    %97 = vsyncpa [#allocation4], 1

</llo_original>
